<compile_context>
chip_gen: v6e
topology: v6e:2x2x1
jax: 0.10.0
libtpu: 0.0.40
codegen_flags: <defaults>
</compile_context>

<pallas_src>
import functools

import jax
import jax.numpy as jnp
from jax import lax
from jax.experimental import pallas as pl
from jax.experimental.pallas import tpu as pltpu

_LANES = 128


def _exp_sum_kernel(x_ref, sum_ref, *, tr, tiles_per_split, rows_valid, need_mask):
    """Pass 1: per-lane partial sums of exp(x), accumulated per core-split."""
    c = pl.program_id(0)          # core split (parallel; megacore on v7x)
    i = pl.program_id(1)          # tile within split (arbitrary / reduction)

    @pl.when(i == 0)
    def _():
        sum_ref[...] = jnp.zeros_like(sum_ref)

    e = jnp.exp(x_ref[...].astype(jnp.float32))

    if need_mask:
        # Zero out rows that belong to a partial (or fully out-of-range) block.
        tile_idx = c * tiles_per_split + i
        row_ids = tile_idx * tr + lax.broadcasted_iota(jnp.int32, (tr, 1), 0)
        e = jnp.where(row_ids < rows_valid, e, 0.0)

    # Per-lane accumulation (VPU add) -- cross-lane reduce happens once, outside.
    sum_ref[...] += jnp.sum(e, axis=0, keepdims=True)


def _scale_kernel(x_ref, inv_ref, o_ref):
    """Pass 2: out = exp(x) * (1/denominator); exact reciprocal hoisted to wrapper."""
    e = jnp.exp(x_ref[...].astype(jnp.float32))
    o_ref[...] = (e * inv_ref[0, 0]).astype(o_ref.dtype)


def global_softmax(x, *, tile_rows=2048):
    """exp(x) / exp(x).sum()  — matches the PyTorch module exactly."""
    orig_shape = x.shape
    total = x.size
    dtype = x.dtype
    itemsize = jnp.dtype(dtype).itemsize

    # ---- minimal lane/sublane-aligned layout --------------------------------
    sub = 8 * max(1, 4 // itemsize)                 # 8 (f32) / 16 (bf16) / 32 (i8)
    rows_needed = pl.cdiv(total, _LANES)
    rows = pl.cdiv(rows_needed, sub) * sub          # minimal aligned row count
    padded = rows * _LANES

    x_flat = x.reshape(-1)
    if padded != total:
        # exp(-inf) == 0, so the tiny pad never changes the global denominator.
        pad = jnp.full((padded - total,), -jnp.inf, dtype=dtype)
        x_flat = jnp.concatenate([x_flat, pad])
    x2d = x_flat.reshape(rows, _LANES)

    # ---- tile math -----------------------------------------------------------
    tr = min(int(tile_rows), rows)
    tr = max(sub, (tr // sub) * sub)                # sublane-aligned tile rows
    num_tiles = pl.cdiv(rows, tr)

    n_splits = 2 if num_tiles >= 2 else 1           # 2-TC sharding of pass 1 (v7x)
    tps = pl.cdiv(num_tiles, n_splits)
    need_mask = (num_tiles * tr != rows) or (n_splits * tps != num_tiles)

    # ---- pass 1: tiled exp + per-lane partial sums ---------------------------
    kern1 = functools.partial(
        _exp_sum_kernel, tr=tr, tiles_per_split=tps, rows_valid=rows,
        need_mask=need_mask)

    def in_map1(c, i):
        # Clamp so an out-of-range step (odd tile count) re-reads the last valid
        # block; its contribution is masked to zero inside the kernel.
        return (jnp.minimum(c * tps + i, num_tiles - 1), 0)

    lane_sums = pl.pallas_call(
        kern1,
        out_shape=jax.ShapeDtypeStruct((n_splits, _LANES), jnp.float32),
        grid_spec=pltpu.PrefetchScalarGridSpec(
            num_scalar_prefetch=0,
            grid=(n_splits, tps),
            in_specs=[pl.BlockSpec((tr, _LANES), in_map1)],
            out_specs=pl.BlockSpec((1, _LANES), lambda c, i: (c, 0)),
        ),
        compiler_params=pltpu.CompilerParams(
            dimension_semantics=("parallel", "arbitrary"),
        ),
        cost_estimate=pl.CostEstimate(
            flops=2 * padded,
            transcendentals=padded,
            bytes_accessed=padded * itemsize + n_splits * _LANES * 4,
        ),
    )(x2d)

    # Single cross-lane reduce + exact reciprocal, computed once.
    denom = jnp.sum(lane_sums)
    inv = (1.0 / denom).reshape(1, 1).astype(jnp.float32)

    # ---- pass 2: tiled exp(x) * inv_denom (recompute exp, parallel tiles) ----
    out2d = pl.pallas_call(
        _scale_kernel,
        out_shape=jax.ShapeDtypeStruct((rows, _LANES), dtype),
        grid_spec=pltpu.PrefetchScalarGridSpec(
            num_scalar_prefetch=0,
            grid=(num_tiles,),
            in_specs=[
                pl.BlockSpec((tr, _LANES), lambda i: (i, 0)),
                pl.BlockSpec((1, 1), lambda i: (0, 0)),
            ],
            out_specs=pl.BlockSpec((tr, _LANES), lambda i: (i, 0)),
        ),
        compiler_params=pltpu.CompilerParams(
            dimension_semantics=("parallel",),
        ),
        cost_estimate=pl.CostEstimate(
            flops=padded,
            transcendentals=padded,
            bytes_accessed=2 * padded * itemsize + 4,
        ),
    )(x2d, inv)

    out_flat = out2d.reshape(-1)
    if padded != total:
        out_flat = out_flat[:total]
    return out_flat.reshape(orig_shape)


if __name__ == "__main__":
    key = jax.random.PRNGKey(0)
    # NCHW input, small synthetic shape.
    x = jax.random.normal(key, (2, 4, 16, 16), dtype=jnp.float32)

    out = global_softmax(x)
    out = jax.block_until_ready(out)

    # Sanity check against plain JAX reference (same math as the torch module).
    ref = jnp.exp(x) / jnp.exp(x).sum()
    assert out.shape == x.shape
    assert jnp.allclose(out, ref, rtol=1e-5, atol=1e-6)
    assert jnp.allclose(out.sum(), 1.0, rtol=1e-5, atol=1e-6)

    print("KERNEL_OK")
</pallas_src>

<mosaic_0001>
module attributes {stable_mosaic.version = 11 : i64} {
  func.func @_exp_sum_kernel(%arg0: i32, %arg1: i32, %arg2: memref<16x128xf32, #tpu.memory_space<vmem>>, %arg3: memref<1x128xf32, #tpu.memory_space<vmem>>) attributes {dimension_semantics = [#tpu.dimension_semantics<parallel>, #tpu.dimension_semantics<arbitrary>], iteration_bounds = array<i64: 1, 1>, scalar_prefetch = 0 : i64, scratch_operands = 0 : i64, tpu.core_type = #tpu.core_type<tc>, window_params = [{transform_indices = @transform_0, window_bounds = array<i64: 16, 128>}, {transform_indices = @transform_1, window_bounds = array<i64: 1, 128>}]} {
    %c0_i32 = arith.constant 0 : i32
    %0 = arith.cmpi eq, %arg1, %c0_i32 : i32
    %1 = arith.extui %0 : i1 to i32
    %c0_i32_0 = arith.constant 0 : i32
    %2 = arith.cmpi ne, %1, %c0_i32_0 : i32
    scf.if %2 {
      %cst_6 = arith.constant 0.000000e+00 : f32
      %10 = vector.broadcast %cst_6 : f32 to vector<1x128xf32>
      %c0_7 = arith.constant 0 : index
      %c0_8 = arith.constant 0 : index
      %11 = vector.load %arg3[%c0_7, %c0_8] : memref<1x128xf32, #tpu.memory_space<vmem>>, vector<1x128xf32>
      tpu.vector_store %arg3[%c0_7, %c0_8], %10 {strides = array<i32>} : memref<1x128xf32, #tpu.memory_space<vmem>>, vector<1x128xf32>,
    } else {
    }
    %c0 = arith.constant 0 : index
    %c0_1 = arith.constant 0 : index
    %3 = vector.load %arg2[%c0, %c0_1] : memref<16x128xf32, #tpu.memory_space<vmem>>, vector<16x128xf32>
    %4 = math.exp %3 : vector<16x128xf32>
    %c0_2 = arith.constant 0 : index
    %c0_3 = arith.constant 0 : index
    %5 = vector.load %arg3[%c0_2, %c0_3] : memref<1x128xf32, #tpu.memory_space<vmem>>, vector<1x128xf32>
    %cst = arith.constant dense<0.000000e+00> : vector<128xf32>
    %6 = vector.multi_reduction <add>, %4, %cst [0] : vector<16x128xf32> to vector<128xf32>
    %7 = vector.shape_cast %6 : vector<128xf32> to vector<1x128xf32>
    %8 = arith.addf %5, %7 : vector<1x128xf32>
    %c0_4 = arith.constant 0 : index
    %c0_5 = arith.constant 0 : index
    %9 = vector.load %arg3[%c0_4, %c0_5] : memref<1x128xf32, #tpu.memory_space<vmem>>, vector<1x128xf32>
    tpu.vector_store %arg3[%c0_4, %c0_5], %8 {strides = array<i32>} : memref<1x128xf32, #tpu.memory_space<vmem>>, vector<1x128xf32>,
    return
  }
  func.func @transform_0(%arg0: i32, %arg1: i32) -> (i32, i32) {
    %c1_i32 = arith.constant 1 : i32
    %0 = arith.muli %arg0, %c1_i32 : i32
    %1 = arith.addi %0, %arg1 : i32
    %c0_i32 = arith.constant 0 : i32
    %2 = arith.minsi %1, %c0_i32 : i32
    %c0_i32_0 = arith.constant 0 : i32
    %c0_i32_1 = arith.constant 0 : i32
    return %2, %c0_i32_0 : i32, i32
  }
  func.func @transform_1(%arg0: i32, %arg1: i32) -> (i32, i32) {
    %c0_i32 = arith.constant 0 : i32
    %c0_i32_0 = arith.constant 0 : i32
    return %arg0, %c0_i32 : i32, i32
  }
}

</mosaic_0001>

<llo_original>
// kernel: tpu_custom_call.1
$region0: #{tpu_custom_call.1}
  #allocation0 [shape = 'u32[]', space=smem, size = 0x4, offset = 0x4, fixed_abs, tag = 'smem constant byte address 0x4 - core index']
  #allocation1 [shape = 'u32[144,128]{1,0:T(1,128)}', space=vmem, size = 0x12000, scoped, tag = 'internal scratch']
  %s0 = inlined_call_operand.hbm [shape: f32[16,128], index: 0, kind: input, shape index: {}]
  %s1 = inlined_call_operand.hbm [shape: f32[1,128], index: 1, kind: output, shape index: {}]
  %s2 = sld [smem:[#allocation0]]
  $region22: #{tpu_custom_call.1} parent=0
    _
  %s4 = ssub.s32 1, %s2
  %s5 = scalar_select 0, %s4, %s2
  $region1: #{tpu_custom_call.1} parent=0
    #allocation2 [shape = 'u8[8192]{0}', space=vmem, size = 0x2000, scoped, tag = 'input window, operand 0, single buffered']
    #allocation3 [shape = 's32[1]{0}', space=sflag, size = 0x4, scoped, tag = 'scoped memory for tpu_custom_call.1']
    #allocation4 [shape = 's32[1]{0}', space=sflag, size = 0x4, scoped, tag = 'scoped memory for tpu_custom_call.1']
    #allocation5 [shape = 'u8[512]{0}', space=vmem, size = 0x400, scoped, tag = 'output window, operand 0, single buffered']
    %6 = vsyncpa [#allocation3], 0
    %7 = vsyncpa [#allocation4], 0
    // Predicated region
    $region2: #{tpu_custom_call.1} parent=1 // pred_check
      _
    $region3: #{tpu_custom_call.1} parent=1 // pred_check_branch
      %9 = sbr.rel (0) target = $region5
    $region4: #{tpu_custom_call.1} parent=1 // pred_region
      %s10 = sadd.s32 0, 0
      %p11 = scmp.lt.s32.totalorder %s10, 0
      %s12 = scalar_select %p11, %s10, 0
      %s13 = smul.u32 2, %s12
      %s15 = ssub.s32 256, 256
      %16 = vsyncadd [#allocation3], %s15
      %s17 = smul.addr %s13, 128
      %s18 = scalar_lea.hbm %s0, %s17
      %s19 = sshll.u32 [#allocation2], 4
      %s20 = int_to_ptr.vmem [resolvable:$true] %s19
      %25 = dma.hbm_to_vmem [thread:$0]  %s18, 256, %s20, [#allocation3], 128, 128, 8
    $region5: #{tpu_custom_call.1} parent=1 // pred_fallthru
      _
    // Predicated region
    $region6: #{tpu_custom_call.1} parent=1 // pred_check
      _
    $region7: #{tpu_custom_call.1} parent=1 // pred_check_branch
      %27 = sbr.rel (0) target = $region9
    $region8: #{tpu_custom_call.1} parent=1 // pred_region
      %28 = dma.done [#allocation3], 256
    $region9: #{tpu_custom_call.1} parent=1 // pred_fallthru
      _
    %s29 = sadd.s32 0, 0
    %p30 = scmp.lt.s32.totalorder %s29, 0
    %s31 = scalar_select %p30, %s29, 0
    %s32 = smul.u32 2, %s31
    %p33 = scmp.eq.s32.totalorder 0, 0
    // Predicated region
    $region10: #{tpu_custom_call.1} parent=1 // pred_check
      %p34 = pneg %p33
    $region11: #{tpu_custom_call.1} parent=1 // pred_check_branch
      %36 = sbr.rel (%p34) target = $region13
    $region12: #{tpu_custom_call.1} parent=1 // pred_region
      %37 = vst [vmem:[#allocation5] sm:$0x1] 0.0
    $region13: #{tpu_custom_call.1} parent=1 // pred_fallthru
      _
    %v38 = vld [vmem:[#allocation2] sm:$0xff]
    %v39 = vld [vmem:[#allocation2 + $0x8] sm:$0xff]
    %v40 = vmul.f32 %v38, 1.442695
    %v41 = vpow.pop %v40
    %v42 = vmul.f32 %v39, 1.442695
    %v43 = vpow.pop %v42
    %v44 = vld [vmem:[#allocation5] sm:$0x1]
    %v45 = vadd.f32 %v41, %v43
    %v46 = vrot.slane %v45, 4
    %v47 = vadd.f32 %v45, %v46
    %v48 = vrot.slane %v47, 2
    %v49 = vadd.f32 %v47, %v48
    %v50 = vrot.slane %v49, 1
    %v51 = vadd.f32 %v49, %v50
    %v52 = vadd.f32 %v44, %v51
    %53 = vst [vmem:[#allocation5] sm:$0x1] %v52
    // Predicated region
    $region14: #{tpu_custom_call.1} parent=1 // pred_check
      _
    $region15: #{tpu_custom_call.1} parent=1 // pred_check_branch
      %55 = sbr.rel (0) target = $region17
    $region16: #{tpu_custom_call.1} parent=1 // pred_region
      %s57 = ssub.s32 16, 16
      %58 = vsyncadd [#allocation4], %s57
      %s60 = sshll.u32 [#allocation5], 4
      %s61 = int_to_ptr.vmem [resolvable:$true] %s60
      %63 = dma.vmem_to_hbm [thread:$0]  %s61, 16, %s1, [#allocation4]
    $region17: #{tpu_custom_call.1} parent=1 // pred_fallthru
      _
    // Predicated region
    $region18: #{tpu_custom_call.1} parent=1 // pred_check
      _
    $region19: #{tpu_custom_call.1} parent=1 // pred_check_branch
      %65 = sbr.rel (0) target = $region21
    $region20: #{tpu_custom_call.1} parent=1 // pred_region
      %66 = dma.done [#allocation4], 16
    $region21: #{tpu_custom_call.1} parent=1 // pred_fallthru
      _
    %67 = vsyncpa [#allocation3], 1
    %68 = vsyncpa [#allocation4], 1

</llo_original>
